<compile_context>
chip_gen: v7x
topology: tpu7x:2x2x1
jax: 0.10.0
libtpu: 0.0.40
codegen_flags: <defaults>
</compile_context>

<pallas_src>
import jax
import jax.numpy as jnp
from jax.experimental import pallas as pl
from jax.experimental.pallas import tpu as pltpu


B_TILE = 8          # sublane-aligned batch tile per grid step
LANE = 128          # TPU lane width


def _batch_lstm_kernel(x_ref, wih0_ref, b0_ref, wih1_ref, b1_ref,
                       wlin_ref, blin_ref, out_ref):
    """One batch tile, whole forward (T == 1, zero initial LSTM state)."""
    H = wih1_ref.shape[0]            # wih1 is (H, 4H)
    f32 = jnp.float32
    bf16 = jnp.bfloat16

    def cell_t0(inp_bf16, wih_ref, b_ref):
        # t = 0 specialization: h_prev = c_prev = 0, so
        #   * the recurrent matmul h_prev @ W_hh contributes nothing
        #     (its bias b_hh is already folded into b_ref), and
        #   * the forget-gate term f * c_prev is exactly zero.
        gates = (jnp.dot(inp_bf16, wih_ref[...], preferred_element_type=f32)
                 + b_ref[...])                              # (B_TILE, 4H) f32
        # H is a multiple of 128 -> each slice below is vreg-aligned on the lane axis.
        i = jax.nn.sigmoid(gates[:, 0 * H:1 * H])
        g = jnp.tanh(gates[:, 2 * H:3 * H])
        o = jax.nn.sigmoid(gates[:, 3 * H:4 * H])
        c_new = i * g
        return o * jnp.tanh(c_new)                          # (B_TILE, H) f32

    x_t = x_ref[:, 0, :].astype(bf16)                       # (B_TILE, I)
    h0 = cell_t0(x_t, wih0_ref, b0_ref)                     # layer 0
    h1 = cell_t0(h0.astype(bf16), wih1_ref, b1_ref)         # layer 1
    feat = jnp.maximum(h1, 0.0)                             # ReLU; dropout = identity (eval)

    # Linear, output lane-padded to 128 (padding columns are zero weights/bias).
    out_ref[...] = (jnp.dot(feat.astype(bf16), wlin_ref[...],
                            preferred_element_type=f32)
                    + blin_ref[...])


def batch_lstm_forward(x, params):
    """x: (B, T, I) float32 with T == 1. Returns (B, output_size) float32."""
    B, T, I = x.shape
    H = params["wih1_bf16"].shape[0]
    O = params["blin"].shape[1]
    O_pad = params["blin_pad"].shape[1]
    # `.view(len(input_seq), -1)` into Linear(H, O) forces seq_len * hidden == hidden.
    assert T == 1, "forward requires seq_len == 1 (Linear.in_features == hidden_layer_size)"

    B_pad = ((B + B_TILE - 1) // B_TILE) * B_TILE
    if B_pad != B:
        x = jnp.pad(x, ((0, B_pad - B), (0, 0), (0, 0)))

    args = (
        x,
        params["wih0_bf16"], params["b0"],
        params["wih1_bf16"], params["b1"],
        params["wlin_pad_bf16"], params["blin_pad"],
    )

    def full_spec(a):
        nd = a.ndim
        return pl.BlockSpec(a.shape, lambda i, _nd=nd: (0,) * _nd)

    out = pl.pallas_call(
        _batch_lstm_kernel,
        out_shape=jax.ShapeDtypeStruct((B_pad, O_pad), jnp.float32),
        grid=(B_pad // B_TILE,),
        in_specs=[pl.BlockSpec((B_TILE, T, I), lambda i: (i, 0, 0))]
                 + [full_spec(a) for a in args[1:]],
        out_specs=pl.BlockSpec((B_TILE, O_pad), lambda i: (i, 0)),
        compiler_params=pltpu.CompilerParams(
            dimension_semantics=("parallel",)),     # batch tiles shard across TCs (v7x)
    )(*args)

    return out[:B, :O]


def init_params(key, input_size=7, hidden_size=128, output_size=1):
    """Synthetic params matching nn.LSTM(num_layers=2) + nn.Linear layouts."""
    H, I, O = hidden_size, input_size, output_size
    O_pad = ((O + LANE - 1) // LANE) * LANE
    k = 1.0 / jnp.sqrt(jnp.float32(H))
    keys = jax.random.split(key, 10)
    u = lambda kk, shape: jax.random.uniform(kk, shape, jnp.float32, -k, k)

    # layer 0: weight_ih_l0 (4H, I), weight_hh_l0 (4H, H), biases (4H,)
    wih0 = u(keys[0], (4 * H, I))
    whh0 = u(keys[1], (4 * H, H))
    bih0 = u(keys[2], (4 * H,))
    bhh0 = u(keys[3], (4 * H,))
    # layer 1: weight_ih_l1 (4H, H), weight_hh_l1 (4H, H), biases (4H,)
    wih1 = u(keys[4], (4 * H, H))
    whh1 = u(keys[5], (4 * H, H))
    bih1 = u(keys[6], (4 * H,))
    bhh1 = u(keys[7], (4 * H,))
    # linear: (O, H), (O,)
    wlin = jax.random.uniform(keys[8], (O, H), jnp.float32, -k, k)
    blin = jax.random.uniform(keys[9], (O,), jnp.float32, -k, k)

    bf16 = jnp.bfloat16
    wlin_T = wlin.T                                               # (H, O)
    return {
        # kernel operands (bf16 MXU operands, f32 biases)
        "wih0_bf16": wih0.T.astype(bf16),                         # (I, 4H)
        "b0": (bih0 + bhh0).reshape(1, 4 * H),                    # (1, 4H) f32
        "wih1_bf16": wih1.T.astype(bf16),                         # (H, 4H)
        "b1": (bih1 + bhh1).reshape(1, 4 * H),                    # (1, 4H) f32
        "wlin_pad_bf16": jnp.pad(wlin_T, ((0, 0), (0, O_pad - O))).astype(bf16),  # (H, 128)
        "blin_pad": jnp.pad(blin.reshape(1, O), ((0, 0), (0, O_pad - O))),        # (1, 128) f32
        # reference-only (recurrent weights contribute exactly zero at T == 1)
        "whh0_bf16": whh0.T.astype(bf16),                         # (H, 4H)
        "whh1_bf16": whh1.T.astype(bf16),                         # (H, 4H)
        "wlin_bf16": wlin_T.astype(bf16),                         # (H, O)
        "blin": blin.reshape(1, O),                               # (1, O) f32
    }


def reference_forward(x, params):
    """Pure-JAX reference using the FULL LSTM cell math (incl. W_hh and forget gate),
    with the same bf16-operand / f32-accumulate matmul precision as the kernel."""
    B, T, _ = x.shape
    H = params["wih1_bf16"].shape[0]
    f32, bf16 = jnp.float32, jnp.bfloat16

    def cell(x_t, h, c, wih, whh, b):
        gates = (jnp.dot(x_t.astype(bf16), wih, preferred_element_type=f32)
                 + jnp.dot(h.astype(bf16), whh, preferred_element_type=f32)
                 + b)
        i = jax.nn.sigmoid(gates[:, 0 * H:1 * H])
        f = jax.nn.sigmoid(gates[:, 1 * H:2 * H])
        g = jnp.tanh(gates[:, 2 * H:3 * H])
        o = jax.nn.sigmoid(gates[:, 3 * H:4 * H])
        c_new = f * c + i * g
        return o * jnp.tanh(c_new), c_new

    h0 = c0 = h1 = c1 = jnp.zeros((B, H), f32)
    outs = []
    for t in range(T):
        h0, c0 = cell(x[:, t, :], h0, c0, params["wih0_bf16"], params["whh0_bf16"], params["b0"])
        h1, c1 = cell(h0, h1, c1, params["wih1_bf16"], params["whh1_bf16"], params["b1"])
        outs.append(jnp.maximum(h1, 0.0))
    feat = jnp.concatenate(outs, axis=-1)
    return (jnp.dot(feat.astype(bf16), params["wlin_bf16"], preferred_element_type=f32)
            + params["blin"])


if __name__ == "__main__":
    key = jax.random.PRNGKey(0)
    k_x, k_p = jax.random.split(key)

    B, T, I, H, O = 4, 1, 7, 128, 1   # T must be 1 (see fidelity note above)
    x = jax.random.normal(k_x, (B, T, I), jnp.float32)
    params = init_params(k_p, input_size=I, hidden_size=H, output_size=O)

    out = jax.block_until_ready(batch_lstm_forward(x, params))
    ref = reference_forward(x, params)

    assert out.shape == (B, O)
    assert jnp.allclose(out, ref, atol=5e-3, rtol=5e-3), (out, ref)

    print("KERNEL_OK")
</pallas_src>

<mosaic_0001>
module attributes {stable_mosaic.version = 11 : i64} {
  func.func @_batch_lstm_kernel(%arg0: i32, %arg1: memref<8x1x7xf32, #tpu.memory_space<vmem>>, %arg2: memref<7x512xbf16, #tpu.memory_space<vmem>>, %arg3: memref<1x512xf32, #tpu.memory_space<vmem>>, %arg4: memref<128x512xbf16, #tpu.memory_space<vmem>>, %arg5: memref<1x512xf32, #tpu.memory_space<vmem>>, %arg6: memref<128x128xbf16, #tpu.memory_space<vmem>>, %arg7: memref<1x128xf32, #tpu.memory_space<vmem>>, %arg8: memref<8x128xf32, #tpu.memory_space<vmem>>) attributes {dimension_semantics = [#tpu.dimension_semantics<parallel>], iteration_bounds = array<i64: 1>, scalar_prefetch = 0 : i64, scratch_operands = 0 : i64, tpu.core_type = #tpu.core_type<tc>, window_params = [{transform_indices = @transform_0, window_bounds = array<i64: 8, 1, 7>}, {pipeline_mode = #tpu.pipeline_mode<synchronous>, transform_indices = @transform_1, window_bounds = array<i64: 7, 512>}, {pipeline_mode = #tpu.pipeline_mode<synchronous>, transform_indices = @transform_2, window_bounds = array<i64: 1, 512>}, {pipeline_mode = #tpu.pipeline_mode<synchronous>, transform_indices = @transform_3, window_bounds = array<i64: 128, 512>}, {pipeline_mode = #tpu.pipeline_mode<synchronous>, transform_indices = @transform_4, window_bounds = array<i64: 1, 512>}, {pipeline_mode = #tpu.pipeline_mode<synchronous>, transform_indices = @transform_5, window_bounds = array<i64: 128, 128>}, {pipeline_mode = #tpu.pipeline_mode<synchronous>, transform_indices = @transform_6, window_bounds = array<i64: 1, 128>}, {transform_indices = @transform_7, window_bounds = array<i64: 8, 128>}]} {
    %c0 = arith.constant 0 : index
    %c0_0 = arith.constant 0 : index
    %c0_1 = arith.constant 0 : index
    %0 = vector.load %arg1[%c0, %c0_0, %c0_1] : memref<8x1x7xf32, #tpu.memory_space<vmem>>, vector<8x1x7xf32>
    %1 = vector.shape_cast %0 : vector<8x1x7xf32> to vector<8x7xf32>
    %2 = arith.truncf %1 : vector<8x7xf32> to vector<8x7xbf16>
    %c0_2 = arith.constant 0 : index
    %c0_3 = arith.constant 0 : index
    %3 = vector.load %arg2[%c0_2, %c0_3] : memref<7x512xbf16, #tpu.memory_space<vmem>>, vector<7x512xbf16>
    %cst = arith.constant dense<0.000000e+00> : vector<8x512xf32>
    %4 = tpu.matmul %2, %3, %cst {dimension_numbers = #tpu.dot_dimension_numbers<[1], [0], [0], [1], [0, 0, 1, 1], [], []>} : vector<8x7xbf16>, vector<7x512xbf16>, vector<8x512xf32> -> vector<8x512xf32>
    %c0_4 = arith.constant 0 : index
    %c0_5 = arith.constant 0 : index
    %5 = vector.load %arg3[%c0_4, %c0_5] : memref<1x512xf32, #tpu.memory_space<vmem>>, vector<1x512xf32>
    %6 = vector.broadcast %5 : vector<1x512xf32> to vector<8x512xf32>
    %7 = arith.addf %4, %6 : vector<8x512xf32>
    %8 = vector.extract_strided_slice %7 {offsets = [0, 0], sizes = [8, 128], strides = [1, 1]} : vector<8x512xf32> to vector<8x128xf32>
    %9 = arith.negf %8 : vector<8x128xf32>
    %10 = math.exp %9 : vector<8x128xf32>
    %cst_6 = arith.constant 1.000000e+00 : f32
    %11 = vector.broadcast %cst_6 : f32 to vector<8x128xf32>
    %12 = arith.addf %11, %10 : vector<8x128xf32>
    %13 = arith.divf %11, %12 : vector<8x128xf32>
    %14 = vector.extract_strided_slice %7 {offsets = [0, 256], sizes = [8, 128], strides = [1, 1]} : vector<8x512xf32> to vector<8x128xf32>
    %15 = math.tanh %14 : vector<8x128xf32>
    %16 = vector.extract_strided_slice %7 {offsets = [0, 384], sizes = [8, 128], strides = [1, 1]} : vector<8x512xf32> to vector<8x128xf32>
    %17 = arith.negf %16 : vector<8x128xf32>
    %18 = math.exp %17 : vector<8x128xf32>
    %cst_7 = arith.constant 1.000000e+00 : f32
    %19 = vector.broadcast %cst_7 : f32 to vector<8x128xf32>
    %20 = arith.addf %19, %18 : vector<8x128xf32>
    %21 = arith.divf %19, %20 : vector<8x128xf32>
    %22 = arith.mulf %13, %15 : vector<8x128xf32>
    %23 = math.tanh %22 : vector<8x128xf32>
    %24 = arith.mulf %21, %23 : vector<8x128xf32>
    %25 = arith.truncf %24 : vector<8x128xf32> to vector<8x128xbf16>
    %c0_8 = arith.constant 0 : index
    %c0_9 = arith.constant 0 : index
    %26 = vector.load %arg4[%c0_8, %c0_9] : memref<128x512xbf16, #tpu.memory_space<vmem>>, vector<128x512xbf16>
    %cst_10 = arith.constant dense<0.000000e+00> : vector<8x512xf32>
    %27 = tpu.matmul %25, %26, %cst_10 {dimension_numbers = #tpu.dot_dimension_numbers<[1], [0], [0], [1], [0, 0, 1, 1], [], []>} : vector<8x128xbf16>, vector<128x512xbf16>, vector<8x512xf32> -> vector<8x512xf32>
    %c0_11 = arith.constant 0 : index
    %c0_12 = arith.constant 0 : index
    %28 = vector.load %arg5[%c0_11, %c0_12] : memref<1x512xf32, #tpu.memory_space<vmem>>, vector<1x512xf32>
    %29 = vector.broadcast %28 : vector<1x512xf32> to vector<8x512xf32>
    %30 = arith.addf %27, %29 : vector<8x512xf32>
    %31 = vector.extract_strided_slice %30 {offsets = [0, 0], sizes = [8, 128], strides = [1, 1]} : vector<8x512xf32> to vector<8x128xf32>
    %32 = arith.negf %31 : vector<8x128xf32>
    %33 = math.exp %32 : vector<8x128xf32>
    %cst_13 = arith.constant 1.000000e+00 : f32
    %34 = vector.broadcast %cst_13 : f32 to vector<8x128xf32>
    %35 = arith.addf %34, %33 : vector<8x128xf32>
    %36 = arith.divf %34, %35 : vector<8x128xf32>
    %37 = vector.extract_strided_slice %30 {offsets = [0, 256], sizes = [8, 128], strides = [1, 1]} : vector<8x512xf32> to vector<8x128xf32>
    %38 = math.tanh %37 : vector<8x128xf32>
    %39 = vector.extract_strided_slice %30 {offsets = [0, 384], sizes = [8, 128], strides = [1, 1]} : vector<8x512xf32> to vector<8x128xf32>
    %40 = arith.negf %39 : vector<8x128xf32>
    %41 = math.exp %40 : vector<8x128xf32>
    %cst_14 = arith.constant 1.000000e+00 : f32
    %42 = vector.broadcast %cst_14 : f32 to vector<8x128xf32>
    %43 = arith.addf %42, %41 : vector<8x128xf32>
    %44 = arith.divf %42, %43 : vector<8x128xf32>
    %45 = arith.mulf %36, %38 : vector<8x128xf32>
    %46 = math.tanh %45 : vector<8x128xf32>
    %47 = arith.mulf %44, %46 : vector<8x128xf32>
    %cst_15 = arith.constant 0.000000e+00 : f32
    %48 = vector.broadcast %cst_15 : f32 to vector<8x128xf32>
    %49 = arith.maximumf %47, %48 : vector<8x128xf32>
    %50 = arith.truncf %49 : vector<8x128xf32> to vector<8x128xbf16>
    %c0_16 = arith.constant 0 : index
    %c0_17 = arith.constant 0 : index
    %51 = vector.load %arg6[%c0_16, %c0_17] : memref<128x128xbf16, #tpu.memory_space<vmem>>, vector<128x128xbf16>
    %cst_18 = arith.constant dense<0.000000e+00> : vector<8x128xf32>
    %52 = tpu.matmul %50, %51, %cst_18 {dimension_numbers = #tpu.dot_dimension_numbers<[1], [0], [0], [1], [0, 0, 1, 1], [], []>} : vector<8x128xbf16>, vector<128x128xbf16>, vector<8x128xf32> -> vector<8x128xf32>
    %c0_19 = arith.constant 0 : index
    %c0_20 = arith.constant 0 : index
    %53 = vector.load %arg7[%c0_19, %c0_20] : memref<1x128xf32, #tpu.memory_space<vmem>>, vector<1x128xf32>
    %54 = vector.broadcast %53 : vector<1x128xf32> to vector<8x128xf32>
    %55 = arith.addf %52, %54 : vector<8x128xf32>
    %c0_21 = arith.constant 0 : index
    %c0_22 = arith.constant 0 : index
    %56 = vector.load %arg8[%c0_21, %c0_22] : memref<8x128xf32, #tpu.memory_space<vmem>>, vector<8x128xf32>
    tpu.vector_store %arg8[%c0_21, %c0_22], %55 {strides = array<i32>} : memref<8x128xf32, #tpu.memory_space<vmem>>, vector<8x128xf32>,
    return
  }
  func.func @transform_0(%arg0: i32) -> (i32, i32, i32) {
    %c0_i32 = arith.constant 0 : i32
    %c0_i32_0 = arith.constant 0 : i32
    %c0_i32_1 = arith.constant 0 : i32
    return %arg0, %c0_i32, %c0_i32_0 : i32, i32, i32
  }
  func.func @transform_1(%arg0: i32) -> (i32, i32) {
    %c0_i32 = arith.constant 0 : i32
    %c0_i32_0 = arith.constant 0 : i32
    %c0_i32_1 = arith.constant 0 : i32
    return %c0_i32, %c0_i32_0 : i32, i32
  }
  func.func @transform_2(%arg0: i32) -> (i32, i32) {
    %c0_i32 = arith.constant 0 : i32
    %c0_i32_0 = arith.constant 0 : i32
    %c0_i32_1 = arith.constant 0 : i32
    return %c0_i32, %c0_i32_0 : i32, i32
  }
  func.func @transform_3(%arg0: i32) -> (i32, i32) {
    %c0_i32 = arith.constant 0 : i32
    %c0_i32_0 = arith.constant 0 : i32
    %c0_i32_1 = arith.constant 0 : i32
    return %c0_i32, %c0_i32_0 : i32, i32
  }
  func.func @transform_4(%arg0: i32) -> (i32, i32) {
    %c0_i32 = arith.constant 0 : i32
    %c0_i32_0 = arith.constant 0 : i32
    %c0_i32_1 = arith.constant 0 : i32
    return %c0_i32, %c0_i32_0 : i32, i32
  }
  func.func @transform_5(%arg0: i32) -> (i32, i32) {
    %c0_i32 = arith.constant 0 : i32
    %c0_i32_0 = arith.constant 0 : i32
    %c0_i32_1 = arith.constant 0 : i32
    return %c0_i32, %c0_i32_0 : i32, i32
  }
  func.func @transform_6(%arg0: i32) -> (i32, i32) {
    %c0_i32 = arith.constant 0 : i32
    %c0_i32_0 = arith.constant 0 : i32
    %c0_i32_1 = arith.constant 0 : i32
    return %c0_i32, %c0_i32_0 : i32, i32
  }
  func.func @transform_7(%arg0: i32) -> (i32, i32) {
    %c0_i32 = arith.constant 0 : i32
    %c0_i32_0 = arith.constant 0 : i32
    return %arg0, %c0_i32 : i32, i32
  }
}

</mosaic_0001>

<llo_original>
// kernel: tpu_custom_call.1
$region0: #{tpu_custom_call.1}
  #allocation0 [shape = 'u32[]', space=smem, size = 0x4, offset = 0x4, fixed_abs, tag = 'smem constant byte address 0x4 - core index']
  #allocation1 [shape = 'u32[144,128]{1,0:T(1,128)}', space=vmem, size = 0x12000, scoped, tag = 'internal scratch']
  %s0 = inlined_call_operand.vmem [shape: f32[8,1,7], index: 0, kind: input, shape index: {}]
  %s1 = inlined_call_operand.vmem [shape: bf16[7,512], index: 1, kind: input, shape index: {}]
  %s2 = inlined_call_operand.vmem [shape: f32[1,512], index: 2, kind: input, shape index: {}]
  %s3 = inlined_call_operand.hbm [shape: bf16[128,512], index: 3, kind: input, shape index: {}]
  %s4 = inlined_call_operand.vmem [shape: f32[1,512], index: 4, kind: input, shape index: {}]
  %s5 = inlined_call_operand.hbm [shape: bf16[128,128], index: 5, kind: input, shape index: {}]
  %s6 = inlined_call_operand.vmem [shape: f32[1,128], index: 6, kind: input, shape index: {}]
  %s7 = inlined_call_operand.hbm [shape: f32[8,128], index: 7, kind: output, shape index: {}]
  %s8 = sld [smem:[#allocation0]]
  $region46: #{tpu_custom_call.1} parent=0
    _
  %s10 = ssub.s32 1, %s8
  %s11 = scalar_select 0, %s10, %s8
  $region1: #{tpu_custom_call.1} parent=0
    #allocation2 [shape = 'u8[131072]{0}', space=vmem, size = 0x20000, scoped, tag = 'input window, operand 3, single buffered']
    #allocation3 [shape = 's32[1]{0}', space=sflag, size = 0x4, scoped, tag = 'scoped memory for tpu_custom_call.1']
    #allocation4 [shape = 's32[1]{0}', space=sflag, size = 0x4, scoped, tag = 'scoped memory for tpu_custom_call.1']
    #allocation5 [shape = 'u8[32768]{0}', space=vmem, size = 0x8000, scoped, tag = 'input window, operand 5, single buffered']
    #allocation6 [shape = 's32[1]{0}', space=sflag, size = 0x4, scoped, tag = 'scoped memory for tpu_custom_call.1']
    #allocation7 [shape = 'u8[4096]{0}', space=vmem, size = 0x1000, scoped, tag = 'output window, operand 0, single buffered']
    %12 = vsyncpa [#allocation3], 0
    %13 = vsyncpa [#allocation6], 0
    %14 = vsyncpa [#allocation4], 0
    // Predicated region
    $region2: #{tpu_custom_call.1} parent=1 // pred_check
      _
    $region3: #{tpu_custom_call.1} parent=1 // pred_check_branch
      %16 = sbr.rel (0) target = $region5
    $region4: #{tpu_custom_call.1} parent=1 // pred_region
      _
    $region5: #{tpu_custom_call.1} parent=1 // pred_fallthru
      _
    // Predicated region
    $region6: #{tpu_custom_call.1} parent=1 // pred_check
      _
    $region7: #{tpu_custom_call.1} parent=1 // pred_check_branch
      %18 = sbr.rel (0) target = $region9
    $region8: #{tpu_custom_call.1} parent=1 // pred_region
      _
    $region9: #{tpu_custom_call.1} parent=1 // pred_fallthru
      _
    // Predicated region
    $region10: #{tpu_custom_call.1} parent=1 // pred_check
      _
    $region11: #{tpu_custom_call.1} parent=1 // pred_check_branch
      %20 = sbr.rel (0) target = $region13
    $region12: #{tpu_custom_call.1} parent=1 // pred_region
      _
    $region13: #{tpu_custom_call.1} parent=1 // pred_fallthru
      _
    // Predicated region
    $region14: #{tpu_custom_call.1} parent=1 // pred_check
      _
    $region15: #{tpu_custom_call.1} parent=1 // pred_check_branch
      %22 = sbr.rel (0) target = $region17
    $region16: #{tpu_custom_call.1} parent=1 // pred_region
      %s24 = ssub.s32 4096, 4096
      %25 = vsyncadd [#allocation3], %s24
      %s26 = sshll.u32 [#allocation2], 4
      %s27 = int_to_ptr.vmem [resolvable:$true] %s26
      %32 = dma.hbm_to_vmem [thread:$0]  %s3, 4096, %s27, [#allocation3], 256, 256, 16
    $region17: #{tpu_custom_call.1} parent=1 // pred_fallthru
      _
    // Predicated region
    $region18: #{tpu_custom_call.1} parent=1 // pred_check
      _
    $region19: #{tpu_custom_call.1} parent=1 // pred_check_branch
      %34 = sbr.rel (0) target = $region21
    $region20: #{tpu_custom_call.1} parent=1 // pred_region
      _
    $region21: #{tpu_custom_call.1} parent=1 // pred_fallthru
      _
    // Predicated region
    $region22: #{tpu_custom_call.1} parent=1 // pred_check
      _
    $region23: #{tpu_custom_call.1} parent=1 // pred_check_branch
      %36 = sbr.rel (0) target = $region25
    $region24: #{tpu_custom_call.1} parent=1 // pred_region
      %s38 = ssub.s32 1024, 1024
      %39 = vsyncadd [#allocation6], %s38
      %s40 = sshll.u32 [#allocation5], 4
      %s41 = int_to_ptr.vmem [resolvable:$true] %s40
      %46 = dma.hbm_to_vmem [thread:$0]  %s5, 1024, %s41, [#allocation6], 64, 64, 4
    $region25: #{tpu_custom_call.1} parent=1 // pred_fallthru
      _
    // Predicated region
    $region26: #{tpu_custom_call.1} parent=1 // pred_check
      _
    $region27: #{tpu_custom_call.1} parent=1 // pred_check_branch
      %48 = sbr.rel (0) target = $region29
    $region28: #{tpu_custom_call.1} parent=1 // pred_region
      _
    $region29: #{tpu_custom_call.1} parent=1 // pred_fallthru
      _
    // Predicated region
    $region30: #{tpu_custom_call.1} parent=1 // pred_check
      _
    $region31: #{tpu_custom_call.1} parent=1 // pred_check_branch
      %50 = sbr.rel (0) target = $region33
    $region32: #{tpu_custom_call.1} parent=1 // pred_region
      %51 = dma.done [#allocation3], 4096
    $region33: #{tpu_custom_call.1} parent=1 // pred_fallthru
      _
    // Predicated region
    $region34: #{tpu_custom_call.1} parent=1 // pred_check
      _
    $region35: #{tpu_custom_call.1} parent=1 // pred_check_branch
      %53 = sbr.rel (0) target = $region37
    $region36: #{tpu_custom_call.1} parent=1 // pred_region
      %54 = dma.done [#allocation6], 1024
    $region37: #{tpu_custom_call.1} parent=1 // pred_fallthru
      _
    %v56 = vld [vmem:[%s0] sm:$0x1]
    %v57 = vld [vmem:[%s0 + $0x1] sm:$0x1]
    %v58 = vld [vmem:[%s0 + $0x2] sm:$0x1]
    %v59 = vld [vmem:[%s0 + $0x3] sm:$0x1]
    %v60 = vld [vmem:[%s0 + $0x4] sm:$0x1]
    %v61 = vld [vmem:[%s0 + $0x5] sm:$0x1]
    %v62 = vld [vmem:[%s0 + $0x6] sm:$0x1]
    %v63 = vld [vmem:[%s0 + $0x7] sm:$0x1]
    %v64 = vpack.c.bf16 %v56, %v56
    %v65 = vpack.c.bf16 %v57, %v57
    %v66 = vpack.c.bf16 %v58, %v58
    %v67 = vpack.c.bf16 %v59, %v59
    %v68 = vpack.c.bf16 %v60, %v60
    %v69 = vpack.c.bf16 %v61, %v61
    %v70 = vpack.c.bf16 %v62, %v62
    %v71 = vpack.c.bf16 %v63, %v63
    %v72 = vld [vmem:[%s1] sm:$0xff]
    %v73 = vld [vmem:[%s1 + $0x8] sm:$0xff]
    %v74 = vld [vmem:[%s2] sm:$0xf]
    %v76 = vlaneseq
    %v77 = vshrl.u32 %v76, 7
    %v78 = vsub.s32 0, %v77
    %v79 = vrot.slane %v74, %v78
    %v80 = vlaneseq
    %v81 = vshrl.u32 %v80, 7
    %v82 = vsub.s32 2, %v81
    %v83 = vrot.slane %v74, %v82
    %v84 = vlaneseq
    %v85 = vshrl.u32 %v84, 7
    %v86 = vsub.s32 3, %v85
    %v87 = vrot.slane %v74, %v86
    %v99 = vunpack.c.l.b16 %v64
    %v100 = vunpack.c.l.b16 %v65
    %v101 = vunpack.c.l.b16 %v66
    %v102 = vunpack.c.l.b16 %v67
    %v103 = vunpack.c.l.b16 %v68
    %v104 = vunpack.c.l.b16 %v69
    %v105 = vunpack.c.l.b16 %v70
    %v106 = vunpack.c.l.b16 %v71
    %v107 = vrot.slane %v100, 7
    %vm108 = vcmask 1041409
    %v109 = vsel %vm108, %v107, %v99
    %v110 = vrot.slane %v101, 6
    %vm111 = vcmask 1042434
    %v112 = vsel %vm111, %v110, %v109
    %v113 = vrot.slane %v102, 5
    %vm114 = vcmask 1043459
    %v115 = vsel %vm114, %v113, %v112
    %v116 = vrot.slane %v103, 4
    %vm117 = vcmask 1044484
    %v118 = vsel %vm117, %v116, %v115
    %v119 = vrot.slane %v104, 3
    %vm120 = vcmask 1045509
    %v121 = vsel %vm120, %v119, %v118
    %v122 = vrot.slane %v105, 2
    %vm123 = vcmask 1046534
    %v124 = vsel %vm123, %v122, %v121
    %v125 = vrot.slane %v106, 1
    %vm126 = vcmask 1047559
    %v127 = vsel %vm126, %v125, %v124
    %v128 = vpack.c.b16 %v127, %v127
    %v131 = vunpack.c.l.b16 %v72
    %v132 = vunpack.c.h.b16 %v72
    %v133 = vunpack.c.l.b16 %v73
    %v134 = vunpack.c.h.b16 %v73
    %v135 = vpack.c.b16 %v131, %v131
    %v136 = vpack.c.b16 %v132, %v132
    %v137 = vpack.c.b16 %v133, %v133
    %v138 = vpack.c.b16 %v134, %v134
    %vm139 = vcmask 56320
    %v141 = vsel %vm139, %v128, 0
    %vm143 = vcmask 1042432
    %vm144 = vcmask 1043456
    %v145 = vsel %vm143, 4294967295, 65535
    %v146 = vsel %vm144, %v145, 0
    %v148 = vand.u32 %v135, %v146
    %v151 = vand.u32 %v136, %v146
    %v154 = vand.u32 %v137, %v146
    %v157 = vand.u32 %v138, %v146
    %159 = vmatprep.subr.bf16.mxu0 %v151
    %160 = vmatpush1.bf16.msra.mxu0 %v148
    %161 = vmatprep.subr.bf16.mxu0 0
    %162 = vmatpush1.bf16.msra.mxu0 0
    %163 = vmatprep.subr.bf16.mxu0 0
    %164 = vmatpush1.bf16.msra.mxu0 0
    %165 = vmatprep.subr.bf16.mxu0 0
    %166 = vmatpush1.bf16.msra.mxu0 0
    %167 = vmatprep.subr.bf16.mxu0 0
    %168 = vmatpush1.bf16.msra.mxu0 0
    %169 = vmatprep.subr.bf16.mxu0 0
    %170 = vmatpush1.bf16.msra.mxu0 0
    %171 = vmatprep.subr.bf16.mxu0 0
    %172 = vmatpush1.bf16.msra.mxu0 0
    %173 = vmatprep.subr.bf16.mxu0 0
    %174 = vmatpush1.bf16.msra.mxu0 0
    %175 = vmatprep.subr.bf16.mxu0 0
    %176 = vmatpush1.bf16.msra.mxu0 0
    %177 = vmatprep.subr.bf16.mxu0 0
    %178 = vmatpush1.bf16.msra.mxu0 0
    %179 = vmatprep.subr.bf16.mxu0 0
    %180 = vmatpush1.bf16.msra.mxu0 0
    %181 = vmatprep.subr.bf16.mxu0 0
    %182 = vmatpush1.bf16.msra.mxu0 0
    %183 = vmatprep.subr.bf16.mxu0 0
    %184 = vmatpush1.bf16.msra.mxu0 0
    %185 = vmatprep.subr.bf16.mxu0 0
    %186 = vmatpush1.bf16.msra.mxu0 0
    %187 = vmatprep.subr.bf16.mxu0 0
    %188 = vmatpush1.bf16.msra.mxu0 0
    %189 = vmatprep.subr.bf16.mxu0 0
    %190 = vmatpush1.bf16.msra.mxu0 0
    %191 = vmatprep.mubr.bf16.mxu0 0
    %192 = vmatmul.mubr.bf16.gmra.mrb[0].mxu0 %v141
    %v193 = vpop.f32.mrb[0].mxu0
    %v194 = vadd.f32 %v79, %v193
    %v195 = vpop.f32.mrb[0].mxu0
    %v196 = vpop.f32.mrb[0].mxu0
    %v197 = vpop.f32.mrb[0].mxu0
    %198 = vdwg.mxu0
    %199 = vmatprep.subr.bf16.mxu0 %v157
    %200 = vmatpush1.bf16.msra.mxu0 %v154
    %201 = vmatprep.subr.bf16.mxu0 0
    %202 = vmatpush1.bf16.msra.mxu0 0
    %203 = vmatprep.subr.bf16.mxu0 0
    %204 = vmatpush1.bf16.msra.mxu0 0
    %205 = vmatprep.subr.bf16.mxu0 0
    %206 = vmatpush1.bf16.msra.mxu0 0
    %207 = vmatprep.subr.bf16.mxu0 0
    %208 = vmatpush1.bf16.msra.mxu0 0
    %209 = vmatprep.subr.bf16.mxu0 0
    %210 = vmatpush1.bf16.msra.mxu0 0
    %211 = vmatprep.subr.bf16.mxu0 0
    %212 = vmatpush1.bf16.msra.mxu0 0
    %213 = vmatprep.subr.bf16.mxu0 0
    %214 = vmatpush1.bf16.msra.mxu0 0
    %215 = vmatprep.subr.bf16.mxu0 0
    %216 = vmatpush1.bf16.msra.mxu0 0
    %217 = vmatprep.subr.bf16.mxu0 0
    %218 = vmatpush1.bf16.msra.mxu0 0
    %219 = vmatprep.subr.bf16.mxu0 0
    %220 = vmatpush1.bf16.msra.mxu0 0
    %221 = vmatprep.subr.bf16.mxu0 0
    %222 = vmatpush1.bf16.msra.mxu0 0
    %223 = vmatprep.subr.bf16.mxu0 0
    %224 = vmatpush1.bf16.msra.mxu0 0
    %225 = vmatprep.subr.bf16.mxu0 0
    %226 = vmatpush1.bf16.msra.mxu0 0
    %227 = vmatprep.subr.bf16.mxu0 0
    %228 = vmatpush1.bf16.msra.mxu0 0
    %229 = vmatprep.subr.bf16.mxu0 0
    %230 = vmatpush1.bf16.msra.mxu0 0
    %231 = vmatprep.mubr.bf16.mxu0 0
    %232 = vmatmul.mubr.bf16.gmra.mrb[0].mxu0 %v141
    %v233 = vpop.f32.mrb[0].mxu0
    %v234 = vadd.f32 %v83, %v233
    %v235 = vpop.f32.mrb[0].mxu0
    %v236 = vadd.f32 %v87, %v235
    %v237 = vpop.f32.mrb[0].mxu0
    %v238 = vpop.f32.mrb[0].mxu0
    %239 = vdwg.mxu0
    %v240 = vxor.u32 %v194, 2147483648
    %v241 = vmul.f32 %v240, 1.442695
    %v242 = vpow.pop %v241
    %v243 = vadd.f32 %v242, 1.0
    %v244 = vrcp.pop %v243
    %v245 = vmul.f32 1.0, %v244
    %v246 = vtanh.pop %v234
    %v247 = vxor.u32 %v236, 2147483648
    %v248 = vmul.f32 %v247, 1.442695
    %v249 = vpow.pop %v248
    %v250 = vadd.f32 %v249, 1.0
    %v251 = vrcp.pop %v250
    %v252 = vmul.f32 1.0, %v251
    %v253 = vmul.f32 %v245, %v246
    %v254 = vtanh.pop %v253
    %v255 = vmul.f32 %v252, %v254
    %v256 = vpack.c.bf16 %v255, %v255
    %v257 = vld [vmem:[#allocation2] sm:$0xff]
    %v258 = vld [vmem:[#allocation2 + $0x8] sm:$0xff]
    %v259 = vld [vmem:[#allocation2 + $0x10] sm:$0xff]
    %v260 = vld [vmem:[#allocation2 + $0x18] sm:$0xff]
    %v261 = vld [vmem:[#allocation2 + $0x20] sm:$0xff]
    %v262 = vld [vmem:[#allocation2 + $0x28] sm:$0xff]
    %v263 = vld [vmem:[#allocation2 + $0x30] sm:$0xff]
    %v264 = vld [vmem:[#allocation2 + $0x38] sm:$0xff]
    %v265 = vld [vmem:[#allocation2 + $0x40] sm:$0xff]
    %v266 = vld [vmem:[#allocation2 + $0x48] sm:$0xff]
    %v267 = vld [vmem:[#allocation2 + $0x50] sm:$0xff]
    %v268 = vld [vmem:[#allocation2 + $0x58] sm:$0xff]
    %v269 = vld [vmem:[#allocation2 + $0x60] sm:$0xff]
    %v270 = vld [vmem:[#allocation2 + $0x68] sm:$0xff]
    %v271 = vld [vmem:[#allocation2 + $0x70] sm:$0xff]
    %v272 = vld [vmem:[#allocation2 + $0x78] sm:$0xff]
    %v273 = vld [vmem:[#allocation2 + $0x80] sm:$0xff]
    %v274 = vld [vmem:[#allocation2 + $0x88] sm:$0xff]
    %v275 = vld [vmem:[#allocation2 + $0x90] sm:$0xff]
    %v276 = vld [vmem:[#allocation2 + $0x98] sm:$0xff]
    %v277 = vld [vmem:[#allocation2 + $0xa0] sm:$0xff]
    %v278 = vld [vmem:[#allocation2 + $0xa8] sm:$0xff]
    %v279 = vld [vmem:[#allocation2 + $0xb0] sm:$0xff]
    %v280 = vld [vmem:[#allocation2 + $0xb8] sm:$0xff]
    %v281 = vld [vmem:[#allocation2 + $0xc0] sm:$0xff]
    %v282 = vld [vmem:[#allocation2 + $0xc8] sm:$0xff]
    %v283 = vld [vmem:[#allocation2 + $0xd0] sm:$0xff]
    %v284 = vld [vmem:[#allocation2 + $0xd8] sm:$0xff]
    %v285 = vld [vmem:[#allocation2 + $0xe0] sm:$0xff]
    %v286 = vld [vmem:[#allocation2 + $0xe8] sm:$0xff]
    %v287 = vld [vmem:[#allocation2 + $0xf0] sm:$0xff]
    %v288 = vld [vmem:[#allocation2 + $0xf8] sm:$0xff]
    %v289 = vld [vmem:[%s4] sm:$0xf]
    %v291 = vlaneseq
    %v292 = vshrl.u32 %v291, 7
    %v293 = vsub.s32 0, %v292
    %v294 = vrot.slane %v289, %v293
    %v295 = vlaneseq
    %v296 = vshrl.u32 %v295, 7
    %v297 = vsub.s32 2, %v296
    %v298 = vrot.slane %v289, %v297
    %v299 = vlaneseq
    %v300 = vshrl.u32 %v299, 7
    %v301 = vsub.s32 3, %v300
    %v302 = vrot.slane %v289, %v301
    %v338 = vunpack.c.l.b16 %v257
    %v339 = vunpack.c.h.b16 %v257
    %v340 = vunpack.c.l.b16 %v258
    %v341 = vunpack.c.h.b16 %v258
    %v342 = vunpack.c.l.b16 %v259
    %v343 = vunpack.c.h.b16 %v259
    %v344 = vunpack.c.l.b16 %v260
    %v345 = vunpack.c.h.b16 %v260
    %v346 = vunpack.c.l.b16 %v261
    %v347 = vunpack.c.h.b16 %v261
    %v348 = vunpack.c.l.b16 %v262
    %v349 = vunpack.c.h.b16 %v262
    %v350 = vunpack.c.l.b16 %v263
    %v351 = vunpack.c.h.b16 %v263
    %v352 = vunpack.c.l.b16 %v264
    %v353 = vunpack.c.h.b16 %v264
    %v354 = vunpack.c.l.b16 %v265
    %v355 = vunpack.c.h.b16 %v265
    %v356 = vunpack.c.l.b16 %v266
    %v357 = vunpack.c.h.b16 %v266
    %v358 = vunpack.c.l.b16 %v267
    %v359 = vunpack.c.h.b16 %v267
    %v360 = vunpack.c.l.b16 %v268
    %v361 = vunpack.c.h.b16 %v268
    %v362 = vunpack.c.l.b16 %v269
    %v363 = vunpack.c.h.b16 %v269
    %v364 = vunpack.c.l.b16 %v270
    %v365 = vunpack.c.h.b16 %v270
    %v366 = vunpack.c.l.b16 %v271
    %v367 = vunpack.c.h.b16 %v271
    %v368 = vunpack.c.l.b16 %v272
    %v369 = vunpack.c.h.b16 %v272
    %v370 = vunpack.c.l.b16 %v273
    %v371 = vunpack.c.h.b16 %v273
    %v372 = vunpack.c.l.b16 %v274
    %v373 = vunpack.c.h.b16 %v274
    %v374 = vunpack.c.l.b16 %v275
    %v375 = vunpack.c.h.b16 %v275
    %v376 = vunpack.c.l.b16 %v276
    %v377 = vunpack.c.h.b16 %v276
    %v378 = vunpack.c.l.b16 %v277
    %v379 = vunpack.c.h.b16 %v277
    %v380 = vunpack.c.l.b16 %v278
    %v381 = vunpack.c.h.b16 %v278
    %v382 = vunpack.c.l.b16 %v279
    %v383 = vunpack.c.h.b16 %v279
    %v384 = vunpack.c.l.b16 %v280
    %v385 = vunpack.c.h.b16 %v280
    %v386 = vunpack.c.l.b16 %v281
    %v387 = vunpack.c.h.b16 %v281
    %v388 = vunpack.c.l.b16 %v282
    %v389 = vunpack.c.h.b16 %v282
    %v390 = vunpack.c.l.b16 %v283
    %v391 = vunpack.c.h.b16 %v283
    %v392 = vunpack.c.l.b16 %v284
    %v393 = vunpack.c.h.b16 %v284
    %v394 = vunpack.c.l.b16 %v285
    %v395 = vunpack.c.h.b16 %v285
    %v396 = vunpack.c.l.b16 %v286
    %v397 = vunpack.c.h.b16 %v286
    %v398 = vunpack.c.l.b16 %v287
    %v399 = vunpack.c.h.b16 %v287
    %v400 = vunpack.c.l.b16 %v288
    %v401 = vunpack.c.h.b16 %v288
    %v402 = vpack.c.b16 %v342, %v338
    %v403 = vpack.c.b16 %v343, %v339
    %v404 = vpack.c.b16 %v344, %v340
    %v405 = vpack.c.b16 %v345, %v341
    %v406 = vpack.c.b16 %v350, %v346
    %v407 = vpack.c.b16 %v351, %v347
    %v408 = vpack.c.b16 %v352, %v348
    %v409 = vpack.c.b16 %v353, %v349
    %v410 = vpack.c.b16 %v358, %v354
    %v411 = vpack.c.b16 %v359, %v355
    %v412 = vpack.c.b16 %v360, %v356
    %v413 = vpack.c.b16 %v361, %v357
    %v414 = vpack.c.b16 %v366, %v362
    %v415 = vpack.c.b16 %v367, %v363
    %v416 = vpack.c.b16 %v368, %v364
    %v417 = vpack.c.b16 %v369, %v365
    %v418 = vpack.c.b16 %v374, %v370
    %v419 = vpack.c.b16 %v375, %v371
    %v420 = vpack.c.b16 %v376, %v372
    %v421 = vpack.c.b16 %v377, %v373
    %v422 = vpack.c.b16 %v382, %v378
    %v423 = vpack.c.b16 %v383, %v379
    %v424 = vpack.c.b16 %v384, %v380
    %v425 = vpack.c.b16 %v385, %v381
    %v426 = vpack.c.b16 %v390, %v386
    %v427 = vpack.c.b16 %v391, %v387
    %v428 = vpack.c.b16 %v392, %v388
    %v429 = vpack.c.b16 %v393, %v389
    %v430 = vpack.c.b16 %v398, %v394
    %v431 = vpack.c.b16 %v399, %v395
    %v432 = vpack.c.b16 %v400, %v396
    %v433 = vpack.c.b16 %v401, %v397
    %466 = vmatprep.subr.bf16.mxu0 %v403
    %467 = vmatpush1.bf16.msra.mxu0 %v402
    %468 = vmatprep.subr.bf16.mxu0 %v407
    %469 = vmatpush1.bf16.msra.mxu0 %v406
    %470 = vmatprep.subr.bf16.mxu0 %v411
    %471 = vmatpush1.bf16.msra.mxu0 %v410
    %472 = vmatprep.subr.bf16.mxu0 %v415
    %473 = vmatpush1.bf16.msra.mxu0 %v414
    %474 = vmatprep.subr.bf16.mxu0 %v419
    %475 = vmatpush1.bf16.msra.mxu0 %v418
    %476 = vmatprep.subr.bf16.mxu0 %v423
    %477 = vmatpush1.bf16.msra.mxu0 %v422
    %478 = vmatprep.subr.bf16.mxu0 %v427
    %479 = vmatpush1.bf16.msra.mxu0 %v426
    %480 = vmatprep.subr.bf16.mxu0 %v431
    %481 = vmatpush1.bf16.msra.mxu0 %v430
    %482 = vmatprep.subr.bf16.mxu0 0
    %483 = vmatpush1.bf16.msra.mxu0 0
    %484 = vmatprep.subr.bf16.mxu0 0
    %485 = vmatpush1.bf16.msra.mxu0 0
    %486 = vmatprep.subr.bf16.mxu0 0
    %487 = vmatpush1.bf16.msra.mxu0 0
    %488 = vmatprep.subr.bf16.mxu0 0
    %489 = vmatpush1.bf16.msra.mxu0 0
    %490 = vmatprep.subr.bf16.mxu0 0
    %491 = vmatpush1.bf16.msra.mxu0 0
    %492 = vmatprep.subr.bf16.mxu0 0
    %493 = vmatpush1.bf16.msra.mxu0 0
    %494 = vmatprep.subr.bf16.mxu0 0
    %495 = vmatpush1.bf16.msra.mxu0 0
    %496 = vmatprep.subr.bf16.mxu0 0
    %497 = vmatpush1.bf16.msra.mxu0 0
    %498 = vmatprep.mubr.bf16.mxu0 0
    %499 = vmatmul.mubr.bf16.gmra.mrb[0].mxu0 %v256
    %v500 = vpop.f32.mrb[0].mxu0
    %v501 = vadd.f32 %v294, %v500
    %v502 = vpop.f32.mrb[0].mxu0
    %v503 = vpop.f32.mrb[0].mxu0
    %v504 = vpop.f32.mrb[0].mxu0
    %505 = vdwg.mxu0
    %506 = vmatprep.subr.bf16.mxu0 %v405
    %507 = vmatpush1.bf16.msra.mxu0 %v404
    %508 = vmatprep.subr.bf16.mxu0 %v409
    %509 = vmatpush1.bf16.msra.mxu0 %v408
    %510 = vmatprep.subr.bf16.mxu0 %v413
    %511 = vmatpush1.bf16.msra.mxu0 %v412
    %512 = vmatprep.subr.bf16.mxu0 %v417
    %513 = vmatpush1.bf16.msra.mxu0 %v416
    %514 = vmatprep.subr.bf16.mxu0 %v421
    %515 = vmatpush1.bf16.msra.mxu0 %v420
    %516 = vmatprep.subr.bf16.mxu0 %v425
    %517 = vmatpush1.bf16.msra.mxu0 %v424
    %518 = vmatprep.subr.bf16.mxu0 %v429
    %519 = vmatpush1.bf16.msra.mxu0 %v428
    %520 = vmatprep.subr.bf16.mxu0 %v433
    %521 = vmatpush1.bf16.msra.mxu0 %v432
    %522 = vmatprep.subr.bf16.mxu0 0
    %523 = vmatpush1.bf16.msra.mxu0 0
    %524 = vmatprep.subr.bf16.mxu0 0
    %525 = vmatpush1.bf16.msra.mxu0 0
    %526 = vmatprep.subr.bf16.mxu0 0
    %527 = vmatpush1.bf16.msra.mxu0 0
    %528 = vmatprep.subr.bf16.mxu0 0
    %529 = vmatpush1.bf16.msra.mxu0 0
    %530 = vmatprep.subr.bf16.mxu0 0
    %531 = vmatpush1.bf16.msra.mxu0 0
    %532 = vmatprep.subr.bf16.mxu0 0
    %533 = vmatpush1.bf16.msra.mxu0 0
    %534 = vmatprep.subr.bf16.mxu0 0
    %535 = vmatpush1.bf16.msra.mxu0 0
    %536 = vmatprep.subr.bf16.mxu0 0
    %537 = vmatpush1.bf16.msra.mxu0 0
    %538 = vmatprep.mubr.bf16.mxu0 0
    %539 = vmatmul.mubr.bf16.gmra.mrb[0].mxu0 %v256
    %v540 = vpop.f32.mrb[0].mxu0
    %v541 = vadd.f32 %v298, %v540
    %v542 = vpop.f32.mrb[0].mxu0
    %v543 = vadd.f32 %v302, %v542
    %v544 = vpop.f32.mrb[0].mxu0
    %v545 = vpop.f32.mrb[0].mxu0
    %546 = vdwg.mxu0
    %v547 = vxor.u32 %v501, 2147483648
    %v548 = vmul.f32 %v547, 1.442695
    %v549 = vpow.pop %v548
    %v550 = vadd.f32 %v549, 1.0
    %v551 = vrcp.pop %v550
    %v552 = vmul.f32 1.0, %v551
    %v553 = vtanh.pop %v541
    %v554 = vxor.u32 %v543, 2147483648
    %v555 = vmul.f32 %v554, 1.442695
    %v556 = vpow.pop %v555
    %v557 = vadd.f32 %v556, 1.0
    %v558 = vrcp.pop %v557
    %v559 = vmul.f32 1.0, %v558
    %v560 = vmul.f32 %v552, %v553
    %v561 = vtanh.pop %v560
    %v562 = vmul.f32 %v559, %v561
    %v563 = vmax.f32 %v562, 0.0
    %v564 = vpack.c.bf16 %v563, %v563
    %v565 = vld [vmem:[#allocation5] sm:$0xf]
    %v566 = vld [vmem:[#allocation5 + $0x4] sm:$0xf]
    %v567 = vld [vmem:[#allocation5 + $0x8] sm:$0xf]
    %v568 = vld [vmem:[#allocation5 + $0xc] sm:$0xf]
    %v569 = vld [vmem:[#allocation5 + $0x10] sm:$0xf]
    %v570 = vld [vmem:[#allocation5 + $0x14] sm:$0xf]
    %v571 = vld [vmem:[#allocation5 + $0x18] sm:$0xf]
    %v572 = vld [vmem:[#allocation5 + $0x1c] sm:$0xf]
    %v573 = vld [vmem:[#allocation5 + $0x20] sm:$0xf]
    %v574 = vld [vmem:[#allocation5 + $0x24] sm:$0xf]
    %v575 = vld [vmem:[#allocation5 + $0x28] sm:$0xf]
    %v576 = vld [vmem:[#allocation5 + $0x2c] sm:$0xf]
    %v577 = vld [vmem:[#allocation5 + $0x30] sm:$0xf]
    %v578 = vld [vmem:[#allocation5 + $0x34] sm:$0xf]
    %v579 = vld [vmem:[#allocation5 + $0x38] sm:$0xf]
    %v580 = vld [vmem:[#allocation5 + $0x3c] sm:$0xf]
    %v581 = vld [vmem:[%s6] sm:$0x1]
    %v583 = vlaneseq
    %v584 = vshrl.u32 %v583, 7
    %v585 = vsub.s32 0, %v584
    %v586 = vrot.slane %v581, %v585
    %v604 = vunpack.c.l.b16 %v565
    %v605 = vunpack.c.l.b16 %v566
    %v606 = vunpack.c.l.b16 %v567
    %v607 = vunpack.c.l.b16 %v568
    %v608 = vunpack.c.l.b16 %v569
    %v609 = vunpack.c.l.b16 %v570
    %v610 = vunpack.c.l.b16 %v571
    %v611 = vunpack.c.l.b16 %v572
    %v612 = vunpack.c.l.b16 %v573
    %v613 = vunpack.c.l.b16 %v574
    %v614 = vunpack.c.l.b16 %v575
    %v615 = vunpack.c.l.b16 %v576
    %v616 = vunpack.c.l.b16 %v577
    %v617 = vunpack.c.l.b16 %v578
    %v618 = vunpack.c.l.b16 %v579
    %v619 = vunpack.c.l.b16 %v580
    %v620 = vpack.c.b16 %v605, %v604
    %v621 = vpack.c.b16 %v607, %v606
    %v622 = vpack.c.b16 %v609, %v608
    %v623 = vpack.c.b16 %v611, %v610
    %v624 = vpack.c.b16 %v613, %v612
    %v625 = vpack.c.b16 %v615, %v614
    %v626 = vpack.c.b16 %v617, %v616
    %v627 = vpack.c.b16 %v619, %v618
    %636 = vmatprep.subr.bf16.mxu0 0
    %637 = vmatpush1.bf16.msra.mxu0 %v620
    %638 = vmatprep.subr.bf16.mxu0 0
    %639 = vmatpush1.bf16.msra.mxu0 %v621
    %640 = vmatprep.subr.bf16.mxu0 0
    %641 = vmatpush1.bf16.msra.mxu0 %v622
    %642 = vmatprep.subr.bf16.mxu0 0
    %643 = vmatpush1.bf16.msra.mxu0 %v623
    %644 = vmatprep.subr.bf16.mxu0 0
    %645 = vmatpush1.bf16.msra.mxu0 %v624
    %646 = vmatprep.subr.bf16.mxu0 0
    %647 = vmatpush1.bf16.msra.mxu0 %v625
    %648 = vmatprep.subr.bf16.mxu0 0
    %649 = vmatpush1.bf16.msra.mxu0 %v626
    %650 = vmatprep.subr.bf16.mxu0 0
    %651 = vmatpush1.bf16.msra.mxu0 %v627
    %652 = vmatprep.subr.bf16.mxu0 0
    %653 = vmatpush1.bf16.msra.mxu0 0
    %654 = vmatprep.subr.bf16.mxu0 0
    %655 = vmatpush1.bf16.msra.mxu0 0
    %656 = vmatprep.subr.bf16.mxu0 0
    %657 = vmatpush1.bf16.msra.mxu0 0
    %658 = vmatprep.subr.bf16.mxu0 0
    %659 = vmatpush1.bf16.msra.mxu0 0
    %660 = vmatprep.subr.bf16.mxu0 0
    %661 = vmatpush1.bf16.msra.mxu0 0
    %662 = vmatprep.subr.bf16.mxu0 0
    %663 = vmatpush1.bf16.msra.mxu0 0
    %664 = vmatprep.subr.bf16.mxu0 0
    %665 = vmatpush1.bf16.msra.mxu0 0
    %666 = vmatprep.subr.bf16.mxu0 0
    %667 = vmatpush1.bf16.msra.mxu0 0
    %668 = vmatprep.mubr.bf16.mxu0 0
    %669 = vmatmul.mubr.bf16.gmra.mrb[0].mxu0 %v564
    %v670 = vpop.f32.mrb[0].mxu0
    %v671 = vadd.f32 %v586, %v670
    %v672 = vpop.f32.mrb[0].mxu0
    %v673 = vpop.f32.mrb[0].mxu0
    %v674 = vpop.f32.mrb[0].mxu0
    %675 = vdwg.mxu0
    %676 = vst [vmem:[#allocation7] sm:$0xff] %v671
    // Predicated region
    $region38: #{tpu_custom_call.1} parent=1 // pred_check
      _
    $region39: #{tpu_custom_call.1} parent=1 // pred_check_branch
      %678 = sbr.rel (0) target = $region41
    $region40: #{tpu_custom_call.1} parent=1 // pred_region
      %s680 = ssub.s32 128, 128
      %681 = vsyncadd [#allocation4], %s680
      %s683 = sshll.u32 [#allocation7], 4
      %s684 = int_to_ptr.vmem [resolvable:$true] %s683
      %686 = dma.vmem_to_hbm [thread:$0]  %s684, 128, %s7, [#allocation4]
    $region41: #{tpu_custom_call.1} parent=1 // pred_fallthru
      _
    // Predicated region
    $region42: #{tpu_custom_call.1} parent=1 // pred_check
      _
    $region43: #{tpu_custom_call.1} parent=1 // pred_check_branch
      %688 = sbr.rel (0) target = $region45
    $region44: #{tpu_custom_call.1} parent=1 // pred_region
      %689 = dma.done [#allocation4], 128
    $region45: #{tpu_custom_call.1} parent=1 // pred_fallthru
      _
    %690 = vsyncpa [#allocation3], 1
    %691 = vsyncpa [#allocation6], 1
    %692 = vsyncpa [#allocation4], 1

</llo_original>
